<compile_context>
chip_gen: v6e
topology: v6e:2x2x1
jax: 0.10.0
libtpu: 0.0.40
codegen_flags: <defaults>
</compile_context>

<pallas_src>
import functools

import jax
import jax.numpy as jnp
import numpy as np
from jax.experimental import pallas as pl
from jax.experimental.pallas import tpu as pltpu


def _conv3x3_relu_block_kernel(x_ref, a_ref, b_ref, o_ref, *, height, width):
    # x_ref: (M*C, H*W)    flattened NCHW inputs for the M images of this block
    # a_ref: (M*K, 9*M*C)  block-diagonal-per-tap weight matrix
    # b_ref: (M*K, 1)      bias[k] replicated at row m*K + k
    # o_ref: (M*K, H*W)    flattened NCHW outputs (torch .view(N,-1) order)
    x = x_ref[...]                                       # (MC, HW) f32
    mc, hw = x.shape

    # Flat lane index (0..H*W-1) of every position; shared by all 9 taps.
    col = jax.lax.broadcasted_iota(jnp.int32, (mc, hw), 1)
    if width & (width - 1) == 0:
        w_idx = jnp.bitwise_and(col, width - 1)          # col % width (pow2)
    else:
        w_idx = col % width

    # 3x3 SAME-padding taps: a lane rotation of the flattened H*W axis plus a
    # boundary mask is exactly x[c, h+dy, w+dx] (zero outside the image).
    taps = []
    for ty in range(3):
        for tx in range(3):
            dy, dx = ty - 1, tx - 1
            s = dy * width + dx                          # flat shift
            rolled = x if s == 0 else pltpu.roll(x, shift=(-s) % hw, axis=1)
            # Row bound: h + dy in [0, H)  <=>  col in [max(0,-dy)*W, min(H, H-dy)*W)
            lo = max(0, -dy) * width
            hi = min(height, height - dy) * width
            valid = (col >= lo) & (col < hi)
            # Column bound: w + dx in [0, W)
            if dx == -1:
                valid = valid & (w_idx >= 1)
            elif dx == 1:
                valid = valid & (w_idx < width - 1)
            taps.append(jnp.where(valid, rolled, 0.0))

    r = jnp.concatenate(taps, axis=0)                    # (9*MC, HW)

    # Single MXU matmul: each output row (image m, out-channel k) is a
    # weighted sum of 9*C rows of r (block-diagonal structure of `a`).
    acc = jnp.dot(a_ref[...], r, preferred_element_type=jnp.float32)
    acc = acc + b_ref[...]                               # (MK,1) -> broadcast
    o_ref[...] = jnp.maximum(acc, 0.0).astype(o_ref.dtype)


def time_warp_forward(x, w_oihw, bias, *, imgs_per_block=8):
    """TimeWarp forward ('sqeeze' path): (B,T,C,H,W) -> (B,T,K*H*W)."""
    B, T, C, H, W = x.shape
    K = w_oihw.shape[0]
    N = B * T
    HW = H * W

    # >=2 parallel grid steps so v7x's two TensorCores both get work; fall
    # back to a single full block if the blocking doesn't divide evenly.
    if N % imgs_per_block != 0 or (imgs_per_block * C) % 8 != 0:
        imgs_per_block = N
    M = imgs_per_block
    n_blocks = N // M

    # Contiguous reshape only (no HBM data movement): row n*C + c holds the
    # flattened H*W plane of image n, input channel c.
    x_flat = x.reshape(N * C, HW)

    # Block-diagonal-per-tap weight matrix, identical for every grid step:
    #   a[m*K + k, t*(M*C) + m*C + c] = w_oihw[k, c, ty, tx],  t = ty*3 + tx
    w_t = jnp.transpose(w_oihw, (2, 3, 0, 1)).reshape(9, K, C)   # (t, K, C)
    eye = jnp.eye(M, dtype=w_oihw.dtype)
    a = jnp.concatenate([jnp.kron(eye, w_t[t]) for t in range(9)], axis=1)
    b_col = jnp.tile(bias, M).reshape(M * K, 1)

    kernel = functools.partial(_conv3x3_relu_block_kernel, height=H, width=W)
    out = pl.pallas_call(
        kernel,
        out_shape=jax.ShapeDtypeStruct((N * K, HW), jnp.float32),
        grid_spec=pltpu.PrefetchScalarGridSpec(
            num_scalar_prefetch=0,
            grid=(n_blocks,),
            in_specs=[
                pl.BlockSpec((M * C, HW), lambda g: (g, 0)),
                pl.BlockSpec((M * K, 9 * M * C), lambda g: (0, 0)),
                pl.BlockSpec((M * K, 1), lambda g: (0, 0)),
            ],
            out_specs=pl.BlockSpec((M * K, HW), lambda g: (g, 0)),
        ),
        compiler_params=pltpu.CompilerParams(
            dimension_semantics=("parallel",),
        ),
    )(x_flat, a, b_col)

    # Row n*K + k of `out` is image n, out-channel k, so a contiguous reshape
    # reproduces torch's x.view(N, -1).view(B, T, -1) on an NCHW tensor.
    return out.reshape(B, T, K * HW)


def _reference_forward(x, w_oihw, bias):
    """Pure-JAX reference (lax conv) for correctness checking."""
    B, T, C, H, W = x.shape
    K = w_oihw.shape[0]
    x_bt = x.reshape(B * T, C, H, W)
    y = jax.lax.conv_general_dilated(
        x_bt, w_oihw, window_strides=(1, 1), padding="SAME",
        dimension_numbers=("NCHW", "OIHW", "NCHW"),
        precision=jax.lax.Precision.HIGHEST)
    y = jnp.maximum(y + bias[None, :, None, None], 0.0)
    return y.reshape(B, T, K * H * W)


if __name__ == "__main__":
    # Small shapes consistent with the module's forward: (B, T, C, H, W)
    B, T, C, H, W = 2, 8, 4, 16, 16
    K = 8  # baseModel output channels

    key = jax.random.PRNGKey(0)
    kx, kw, kb = jax.random.split(key, 3)
    x = jax.random.normal(kx, (B, T, C, H, W), dtype=jnp.float32)
    # Deterministic parameter init (synthetic, not a checkpoint).
    w_oihw = jax.random.normal(kw, (K, C, 3, 3), dtype=jnp.float32) * 0.1
    bias = jax.random.normal(kb, (K,), dtype=jnp.float32) * 0.1

    fwd = jax.jit(time_warp_forward)
    out = jax.block_until_ready(fwd(x, w_oihw, bias))

    ref = _reference_forward(x, w_oihw, bias)
    assert out.shape == (B, T, K * H * W), out.shape
    assert np.allclose(np.asarray(out), np.asarray(ref), atol=1e-4, rtol=1e-4)

    print("KERNEL_OK")
</pallas_src>

<mosaic_0001>
module attributes {stable_mosaic.version = 11 : i64} {
  func.func @_conv3x3_relu_block_kernel(%arg0: i32, %arg1: memref<32x256xf32, #tpu.memory_space<vmem>>, %arg2: memref<64x288xf32, #tpu.memory_space<vmem>>, %arg3: memref<64x1xf32, #tpu.memory_space<vmem>>, %arg4: memref<64x256xf32, #tpu.memory_space<vmem>>) attributes {dimension_semantics = [#tpu.dimension_semantics<parallel>], iteration_bounds = array<i64: 2>, scalar_prefetch = 0 : i64, scratch_operands = 0 : i64, tpu.core_type = #tpu.core_type<tc>, window_params = [{transform_indices = @transform_0, window_bounds = array<i64: 32, 256>}, {pipeline_mode = #tpu.pipeline_mode<synchronous>, transform_indices = @transform_1, window_bounds = array<i64: 64, 288>}, {pipeline_mode = #tpu.pipeline_mode<synchronous>, transform_indices = @transform_2, window_bounds = array<i64: 64, 1>}, {transform_indices = @transform_3, window_bounds = array<i64: 64, 256>}]} {
    %c0 = arith.constant 0 : index
    %c0_0 = arith.constant 0 : index
    %0 = vector.load %arg1[%c0, %c0_0] : memref<32x256xf32, #tpu.memory_space<vmem>>, vector<32x256xf32>
    %1 = tpu.iota {dimensions = array<i32: 1>} : vector<32x256xi32>
    %c15_i32 = arith.constant 15 : i32
    %2 = vector.broadcast %c15_i32 : i32 to vector<32x256xi32>
    %3 = arith.andi %1, %2 : vector<32x256xi32>
    %c17_i32 = arith.constant 17 : i32
    %4 = tpu.dynamic_rotate %0 by %c17_i32 dim 1 : vector<32x256xf32>, i32 -> vector<32x256xf32>
    %c16_i32 = arith.constant 16 : i32
    %5 = vector.broadcast %c16_i32 : i32 to vector<32x256xi32>
    %6 = arith.cmpi sge, %1, %5 : vector<32x256xi32>
    %c256_i32 = arith.constant 256 : i32
    %7 = vector.broadcast %c256_i32 : i32 to vector<32x256xi32>
    %8 = arith.cmpi slt, %1, %7 : vector<32x256xi32>
    %9 = arith.andi %6, %8 : vector<32x256xi1>
    %c1_i32 = arith.constant 1 : i32
    %10 = vector.broadcast %c1_i32 : i32 to vector<32x256xi32>
    %11 = arith.cmpi sge, %3, %10 : vector<32x256xi32>
    %12 = arith.andi %9, %11 : vector<32x256xi1>
    %cst = arith.constant 0.000000e+00 : f32
    %13 = vector.broadcast %cst : f32 to vector<32x256xf32>
    %14 = arith.select %12, %4, %13 : vector<32x256xi1>, vector<32x256xf32>
    %c16_i32_1 = arith.constant 16 : i32
    %15 = tpu.dynamic_rotate %0 by %c16_i32_1 dim 1 : vector<32x256xf32>, i32 -> vector<32x256xf32>
    %c16_i32_2 = arith.constant 16 : i32
    %16 = vector.broadcast %c16_i32_2 : i32 to vector<32x256xi32>
    %17 = arith.cmpi sge, %1, %16 : vector<32x256xi32>
    %c256_i32_3 = arith.constant 256 : i32
    %18 = vector.broadcast %c256_i32_3 : i32 to vector<32x256xi32>
    %19 = arith.cmpi slt, %1, %18 : vector<32x256xi32>
    %20 = arith.andi %17, %19 : vector<32x256xi1>
    %cst_4 = arith.constant 0.000000e+00 : f32
    %21 = vector.broadcast %cst_4 : f32 to vector<32x256xf32>
    %22 = arith.select %20, %15, %21 : vector<32x256xi1>, vector<32x256xf32>
    %c15_i32_5 = arith.constant 15 : i32
    %23 = tpu.dynamic_rotate %0 by %c15_i32_5 dim 1 : vector<32x256xf32>, i32 -> vector<32x256xf32>
    %c16_i32_6 = arith.constant 16 : i32
    %24 = vector.broadcast %c16_i32_6 : i32 to vector<32x256xi32>
    %25 = arith.cmpi sge, %1, %24 : vector<32x256xi32>
    %c256_i32_7 = arith.constant 256 : i32
    %26 = vector.broadcast %c256_i32_7 : i32 to vector<32x256xi32>
    %27 = arith.cmpi slt, %1, %26 : vector<32x256xi32>
    %28 = arith.andi %25, %27 : vector<32x256xi1>
    %c15_i32_8 = arith.constant 15 : i32
    %29 = vector.broadcast %c15_i32_8 : i32 to vector<32x256xi32>
    %30 = arith.cmpi slt, %3, %29 : vector<32x256xi32>
    %31 = arith.andi %28, %30 : vector<32x256xi1>
    %cst_9 = arith.constant 0.000000e+00 : f32
    %32 = vector.broadcast %cst_9 : f32 to vector<32x256xf32>
    %33 = arith.select %31, %23, %32 : vector<32x256xi1>, vector<32x256xf32>
    %c1_i32_10 = arith.constant 1 : i32
    %34 = tpu.dynamic_rotate %0 by %c1_i32_10 dim 1 : vector<32x256xf32>, i32 -> vector<32x256xf32>
    %c0_i32 = arith.constant 0 : i32
    %35 = vector.broadcast %c0_i32 : i32 to vector<32x256xi32>
    %36 = arith.cmpi sge, %1, %35 : vector<32x256xi32>
    %c256_i32_11 = arith.constant 256 : i32
    %37 = vector.broadcast %c256_i32_11 : i32 to vector<32x256xi32>
    %38 = arith.cmpi slt, %1, %37 : vector<32x256xi32>
    %39 = arith.andi %36, %38 : vector<32x256xi1>
    %c1_i32_12 = arith.constant 1 : i32
    %40 = vector.broadcast %c1_i32_12 : i32 to vector<32x256xi32>
    %41 = arith.cmpi sge, %3, %40 : vector<32x256xi32>
    %42 = arith.andi %39, %41 : vector<32x256xi1>
    %cst_13 = arith.constant 0.000000e+00 : f32
    %43 = vector.broadcast %cst_13 : f32 to vector<32x256xf32>
    %44 = arith.select %42, %34, %43 : vector<32x256xi1>, vector<32x256xf32>
    %c0_i32_14 = arith.constant 0 : i32
    %45 = vector.broadcast %c0_i32_14 : i32 to vector<32x256xi32>
    %46 = arith.cmpi sge, %1, %45 : vector<32x256xi32>
    %c256_i32_15 = arith.constant 256 : i32
    %47 = vector.broadcast %c256_i32_15 : i32 to vector<32x256xi32>
    %48 = arith.cmpi slt, %1, %47 : vector<32x256xi32>
    %49 = arith.andi %46, %48 : vector<32x256xi1>
    %cst_16 = arith.constant 0.000000e+00 : f32
    %50 = vector.broadcast %cst_16 : f32 to vector<32x256xf32>
    %51 = arith.select %49, %0, %50 : vector<32x256xi1>, vector<32x256xf32>
    %c255_i32 = arith.constant 255 : i32
    %52 = tpu.dynamic_rotate %0 by %c255_i32 dim 1 : vector<32x256xf32>, i32 -> vector<32x256xf32>
    %c0_i32_17 = arith.constant 0 : i32
    %53 = vector.broadcast %c0_i32_17 : i32 to vector<32x256xi32>
    %54 = arith.cmpi sge, %1, %53 : vector<32x256xi32>
    %c256_i32_18 = arith.constant 256 : i32
    %55 = vector.broadcast %c256_i32_18 : i32 to vector<32x256xi32>
    %56 = arith.cmpi slt, %1, %55 : vector<32x256xi32>
    %57 = arith.andi %54, %56 : vector<32x256xi1>
    %c15_i32_19 = arith.constant 15 : i32
    %58 = vector.broadcast %c15_i32_19 : i32 to vector<32x256xi32>
    %59 = arith.cmpi slt, %3, %58 : vector<32x256xi32>
    %60 = arith.andi %57, %59 : vector<32x256xi1>
    %cst_20 = arith.constant 0.000000e+00 : f32
    %61 = vector.broadcast %cst_20 : f32 to vector<32x256xf32>
    %62 = arith.select %60, %52, %61 : vector<32x256xi1>, vector<32x256xf32>
    %c241_i32 = arith.constant 241 : i32
    %63 = tpu.dynamic_rotate %0 by %c241_i32 dim 1 : vector<32x256xf32>, i32 -> vector<32x256xf32>
    %c0_i32_21 = arith.constant 0 : i32
    %64 = vector.broadcast %c0_i32_21 : i32 to vector<32x256xi32>
    %65 = arith.cmpi sge, %1, %64 : vector<32x256xi32>
    %c240_i32 = arith.constant 240 : i32
    %66 = vector.broadcast %c240_i32 : i32 to vector<32x256xi32>
    %67 = arith.cmpi slt, %1, %66 : vector<32x256xi32>
    %68 = arith.andi %65, %67 : vector<32x256xi1>
    %c1_i32_22 = arith.constant 1 : i32
    %69 = vector.broadcast %c1_i32_22 : i32 to vector<32x256xi32>
    %70 = arith.cmpi sge, %3, %69 : vector<32x256xi32>
    %71 = arith.andi %68, %70 : vector<32x256xi1>
    %cst_23 = arith.constant 0.000000e+00 : f32
    %72 = vector.broadcast %cst_23 : f32 to vector<32x256xf32>
    %73 = arith.select %71, %63, %72 : vector<32x256xi1>, vector<32x256xf32>
    %c240_i32_24 = arith.constant 240 : i32
    %74 = tpu.dynamic_rotate %0 by %c240_i32_24 dim 1 : vector<32x256xf32>, i32 -> vector<32x256xf32>
    %c0_i32_25 = arith.constant 0 : i32
    %75 = vector.broadcast %c0_i32_25 : i32 to vector<32x256xi32>
    %76 = arith.cmpi sge, %1, %75 : vector<32x256xi32>
    %c240_i32_26 = arith.constant 240 : i32
    %77 = vector.broadcast %c240_i32_26 : i32 to vector<32x256xi32>
    %78 = arith.cmpi slt, %1, %77 : vector<32x256xi32>
    %79 = arith.andi %76, %78 : vector<32x256xi1>
    %cst_27 = arith.constant 0.000000e+00 : f32
    %80 = vector.broadcast %cst_27 : f32 to vector<32x256xf32>
    %81 = arith.select %79, %74, %80 : vector<32x256xi1>, vector<32x256xf32>
    %c239_i32 = arith.constant 239 : i32
    %82 = tpu.dynamic_rotate %0 by %c239_i32 dim 1 : vector<32x256xf32>, i32 -> vector<32x256xf32>
    %c0_i32_28 = arith.constant 0 : i32
    %83 = vector.broadcast %c0_i32_28 : i32 to vector<32x256xi32>
    %84 = arith.cmpi sge, %1, %83 : vector<32x256xi32>
    %c240_i32_29 = arith.constant 240 : i32
    %85 = vector.broadcast %c240_i32_29 : i32 to vector<32x256xi32>
    %86 = arith.cmpi slt, %1, %85 : vector<32x256xi32>
    %87 = arith.andi %84, %86 : vector<32x256xi1>
    %c15_i32_30 = arith.constant 15 : i32
    %88 = vector.broadcast %c15_i32_30 : i32 to vector<32x256xi32>
    %89 = arith.cmpi slt, %3, %88 : vector<32x256xi32>
    %90 = arith.andi %87, %89 : vector<32x256xi1>
    %cst_31 = arith.constant 0.000000e+00 : f32
    %91 = vector.broadcast %cst_31 : f32 to vector<32x256xf32>
    %92 = arith.select %90, %82, %91 : vector<32x256xi1>, vector<32x256xf32>
    %93 = tpu.concatenate %14, %22, %33, %44, %51, %62, %73, %81, %92 in 0 : vector<32x256xf32>, vector<32x256xf32>, vector<32x256xf32>, vector<32x256xf32>, vector<32x256xf32>, vector<32x256xf32>, vector<32x256xf32>, vector<32x256xf32>, vector<32x256xf32> -> vector<288x256xf32>
    %c0_32 = arith.constant 0 : index
    %c0_33 = arith.constant 0 : index
    %94 = vector.load %arg2[%c0_32, %c0_33] : memref<64x288xf32, #tpu.memory_space<vmem>>, vector<64x288xf32>
    %cst_34 = arith.constant dense<0.000000e+00> : vector<64x256xf32>
    %95 = tpu.matmul %94, %93, %cst_34 {dimension_numbers = #tpu.dot_dimension_numbers<[1], [0], [0], [1], [0, 0, 1, 1], [], []>} : vector<64x288xf32>, vector<288x256xf32>, vector<64x256xf32> -> vector<64x256xf32>
    %c0_35 = arith.constant 0 : index
    %c0_36 = arith.constant 0 : index
    %96 = vector.load %arg3[%c0_35, %c0_36] : memref<64x1xf32, #tpu.memory_space<vmem>>, vector<64x1xf32>
    %97 = vector.broadcast %96 : vector<64x1xf32> to vector<64x256xf32>
    %98 = arith.addf %95, %97 : vector<64x256xf32>
    %cst_37 = arith.constant 0.000000e+00 : f32
    %99 = vector.broadcast %cst_37 : f32 to vector<64x256xf32>
    %100 = arith.maximumf %98, %99 : vector<64x256xf32>
    %c0_38 = arith.constant 0 : index
    %c0_39 = arith.constant 0 : index
    %101 = vector.load %arg4[%c0_38, %c0_39] : memref<64x256xf32, #tpu.memory_space<vmem>>, vector<64x256xf32>
    tpu.vector_store %arg4[%c0_38, %c0_39], %100 {strides = array<i32>} : memref<64x256xf32, #tpu.memory_space<vmem>>, vector<64x256xf32>,
    return
  }
  func.func @transform_0(%arg0: i32) -> (i32, i32) {
    %c0_i32 = arith.constant 0 : i32
    %c0_i32_0 = arith.constant 0 : i32
    return %arg0, %c0_i32 : i32, i32
  }
  func.func @transform_1(%arg0: i32) -> (i32, i32) {
    %c0_i32 = arith.constant 0 : i32
    %c0_i32_0 = arith.constant 0 : i32
    %c0_i32_1 = arith.constant 0 : i32
    return %c0_i32, %c0_i32_0 : i32, i32
  }
  func.func @transform_2(%arg0: i32) -> (i32, i32) {
    %c0_i32 = arith.constant 0 : i32
    %c0_i32_0 = arith.constant 0 : i32
    %c0_i32_1 = arith.constant 0 : i32
    return %c0_i32, %c0_i32_0 : i32, i32
  }
  func.func @transform_3(%arg0: i32) -> (i32, i32) {
    %c0_i32 = arith.constant 0 : i32
    %c0_i32_0 = arith.constant 0 : i32
    return %arg0, %c0_i32 : i32, i32
  }
}

</mosaic_0001>

<llo_original>
// kernel: tile.8
$region0: #{tile.8}
  #allocation0 [shape = 's32[1]{0}', space=sflag, size = 0x4, scoped, tag = 'scoped memory for tile.8']
  %s0 = inlined_call_operand.vmem [shape: f32[8], index: 0, kind: input, shape index: {}]
  %s1 = inlined_call_operand.vmem [shape: f32[8,8], index: 1, kind: output, shape index: {}]
  // Predicated region
  $region2: #{tile.8} parent=0 // pred_check
    _
  $region3: #{tile.8} parent=0 // pred_check_branch
    %3 = sbr.rel (0) target = $region5
  $region4: #{tile.8} parent=0 // pred_region
    _
  $region5: #{tile.8} parent=0 // pred_fallthru
    _
  %v4 = vld [vmem:[%s0] ss:$0 sm:$0xff]
  %5 = vst [vmem:[%s1] sm:$0xff] %v4

// kernel: tile.0
$region0: #{tile.0}
  %s0 = inlined_call_operand.vmem [shape: f32[8,8], index: 0, kind: input, shape index: {}]
  %s1 = inlined_call_operand.vmem [shape: f32[64,1], index: 1, kind: output, shape index: {}]
  %v2 = vld [vmem:[%s0] sm:$0xff]
  %vm3 = vcmask 7168
  %4 = vst.msk [vmem:[%s1] ss:$8 sm:$0xf] %vm3, %v2
  %5 = vst.msk [vmem:[%s1] ss:$8 sm:$0xf0] %vm3, %v2
  %v6 = vld [vmem:[%s0] sm:$0xff]
  %7 = vrot.lane.b32.xlu0 %v6, 127
  %v8 = vpop.permute.xlu0 %7
  %vm9 = vcmask 7168
  %s10 = scalar_lea.vmem %s1, 1
  %11 = vst.msk [vmem:[%s10] ss:$8 sm:$0xf] %vm9, %v8
  %s12 = scalar_lea.vmem %s1, 1
  %13 = vst.msk [vmem:[%s12] ss:$8 sm:$0xf0] %vm9, %v8
  %v14 = vld [vmem:[%s0] sm:$0xff]
  %15 = vrot.lane.b32.xlu0 %v14, 126
  %v16 = vpop.permute.xlu0 %15
  %vm17 = vcmask 7168
  %s18 = scalar_lea.vmem %s1, 2
  %19 = vst.msk [vmem:[%s18] ss:$8 sm:$0xf] %vm17, %v16
  %s20 = scalar_lea.vmem %s1, 2
  %21 = vst.msk [vmem:[%s20] ss:$8 sm:$0xf0] %vm17, %v16
  %v22 = vld [vmem:[%s0] sm:$0xff]
  %23 = vrot.lane.b32.xlu0 %v22, 125
  %v24 = vpop.permute.xlu0 %23
  %vm25 = vcmask 7168
  %s26 = scalar_lea.vmem %s1, 3
  %27 = vst.msk [vmem:[%s26] ss:$8 sm:$0xf] %vm25, %v24
  %s28 = scalar_lea.vmem %s1, 3
  %29 = vst.msk [vmem:[%s28] ss:$8 sm:$0xf0] %vm25, %v24
  %v30 = vld [vmem:[%s0] sm:$0xff]
  %31 = vrot.lane.b32.xlu0 %v30, 124
  %v32 = vpop.permute.xlu0 %31
  %vm33 = vcmask 7168
  %s34 = scalar_lea.vmem %s1, 4
  %35 = vst.msk [vmem:[%s34] ss:$8 sm:$0xf] %vm33, %v32
  %s36 = scalar_lea.vmem %s1, 4
  %37 = vst.msk [vmem:[%s36] ss:$8 sm:$0xf0] %vm33, %v32
  %v38 = vld [vmem:[%s0] sm:$0xff]
  %39 = vrot.lane.b32.xlu0 %v38, 123
  %v40 = vpop.permute.xlu0 %39
  %vm41 = vcmask 7168
  %s42 = scalar_lea.vmem %s1, 5
  %43 = vst.msk [vmem:[%s42] ss:$8 sm:$0xf] %vm41, %v40
  %s44 = scalar_lea.vmem %s1, 5
  %45 = vst.msk [vmem:[%s44] ss:$8 sm:$0xf0] %vm41, %v40
  %v46 = vld [vmem:[%s0] sm:$0xff]
  %47 = vrot.lane.b32.xlu0 %v46, 122
  %v48 = vpop.permute.xlu0 %47
  %vm49 = vcmask 7168
  %s50 = scalar_lea.vmem %s1, 6
  %51 = vst.msk [vmem:[%s50] ss:$8 sm:$0xf] %vm49, %v48
  %s52 = scalar_lea.vmem %s1, 6
  %53 = vst.msk [vmem:[%s52] ss:$8 sm:$0xf0] %vm49, %v48
  %v54 = vld [vmem:[%s0] sm:$0xff]
  %55 = vrot.lane.b32.xlu0 %v54, 121
  %v56 = vpop.permute.xlu0 %55
  %vm57 = vcmask 7168
  %s58 = scalar_lea.vmem %s1, 7
  %59 = vst.msk [vmem:[%s58] ss:$8 sm:$0xf] %vm57, %v56
  %s60 = scalar_lea.vmem %s1, 7
  %61 = vst.msk [vmem:[%s60] ss:$8 sm:$0xf0] %vm57, %v56

// kernel: time_warp_forward.1
$region0: #{time_warp_forward.1}
  #allocation0 [shape = 'u32[]', space=smem, size = 0x4, offset = 0x4, fixed_abs, tag = 'smem constant byte address 0x4 - core index']
  #allocation1 [shape = 'u32[144,128]{1,0:T(1,128)}', space=vmem, size = 0x12000, scoped, tag = 'internal scratch']
  %s0 = inlined_call_operand.vmem [shape: f32[64,256], index: 0, kind: input, shape index: {}]
  %s1 = inlined_call_operand.vmem [shape: f32[64,288], index: 1, kind: input, shape index: {}]
  %s2 = inlined_call_operand.vmem [shape: f32[64,1], index: 2, kind: input, shape index: {}]
  %s3 = inlined_call_operand.vmem [shape: f32[128,256], index: 3, kind: output, shape index: {}]
  %s4 = sld [smem:[#allocation0]]
  $region45: #{time_warp_forward.1} parent=0
    _
  %s6 = ssub.s32 1, %s4
  %s7 = scalar_select 0, %s6, %s4
  loop: start=0, step=1, limit=4
  $region2: #{time_warp_forward.1} parent=0 // loop_pre_header
    _
  $region3: #{time_warp_forward.1} parent=0 // loop_header
    %s9 = sphi 0, %s13
    %p10 = scmp.ge.s32.totalorder %s9, 4
    %s19 = sphi 0, %s21
    %s22 = sphi 0, %s19
    %s23 = sphi 0, %s22
    %s39 = sphi 0, %s23
    %s43 = sphi 0, %s43
    %s45 = sphi 0, %s43
    %s46 = sphi 0, %s45
    %s60 = sphi 0, %s46
    %s64 = sphi 0, %s64
    %s66 = sphi 0, %s64
    %s67 = sphi 0, %s66
    %s81 = sphi 0, %s67
    %s87 = sphi 0, %s89
    %s90 = sphi 0, %s87
    %s91 = sphi 0, %s90
    %s107 = sphi 0, %s91
  $region4: #{time_warp_forward.1} parent=0 // loop_header_branch
    %12 = sbr.rel (%p10) target = $region8
  $region5: #{time_warp_forward.1} parent=0 // loop_body
    %s14 = ssub.s32 %s9, 1
    %s15 = ssub.s32 %s9, 2
    %s16 = sadd.s32 %s9, 1
    %s17 = ssub.s32 %s9, %s16
    %p18 = scmp.eq.s32.totalorder %s17, 0
    %s20 = sadd.s32 %s19, 1
    %s21 = scalar_select %p18, %s19, %s20
    %p24 = pneg %p18
    %p25 = scmp.eq.s32.totalorder %s9, 1
    %p26 = por %p24, %p25
    %p27 = scmp.ne.s32.totalorder %s19, %s22
    %p28 = scmp.eq.s32.totalorder %s9, 0
    %p29 = por %p27, %p28
    %p30 = scmp.ne.s32.totalorder %s19, %s22
    %p31 = scmp.eq.s32.totalorder %s14, 1
    %p32 = por %p30, %p31
    %p33 = scmp.ne.s32.totalorder %s22, %s23
    %p34 = scmp.eq.s32.totalorder %s14, 0
    %p35 = por %p33, %p34
    %p36 = scmp.ne.s32.totalorder %s22, %s23
    %p37 = scmp.eq.s32.totalorder %s15, 1
    %p38 = por %p36, %p37
    %p40 = scmp.ne.s32.totalorder %s23, %s39
    %p41 = scmp.eq.s32.totalorder %s15, 0
    %p42 = por %p40, %p41
    %s44 = sadd.s32 %s43, 1
    %p47 = scmp.eq.s32.totalorder %s9, 1
    %p48 = scmp.ne.s32.totalorder %s43, %s45
    %p49 = scmp.eq.s32.totalorder %s9, 0
    %p50 = por %p48, %p49
    %p51 = scmp.ne.s32.totalorder %s43, %s45
    %p52 = scmp.eq.s32.totalorder %s14, 1
    %p53 = por %p51, %p52
    %p54 = scmp.ne.s32.totalorder %s45, %s46
    %p55 = scmp.eq.s32.totalorder %s14, 0
    %p56 = por %p54, %p55
    %p57 = scmp.ne.s32.totalorder %s45, %s46
    %p58 = scmp.eq.s32.totalorder %s15, 1
    %p59 = por %p57, %p58
    %p61 = scmp.ne.s32.totalorder %s46, %s60
    %p62 = scmp.eq.s32.totalorder %s15, 0
    %p63 = por %p61, %p62
    %s65 = sadd.s32 %s64, 1
    %p68 = scmp.eq.s32.totalorder %s9, 1
    %p69 = scmp.ne.s32.totalorder %s64, %s66
    %p70 = scmp.eq.s32.totalorder %s9, 0
    %p71 = por %p69, %p70
    %p72 = scmp.ne.s32.totalorder %s64, %s66
    %p73 = scmp.eq.s32.totalorder %s14, 1
    %p74 = por %p72, %p73
    %p75 = scmp.ne.s32.totalorder %s66, %s67
    %p76 = scmp.eq.s32.totalorder %s14, 0
    %p77 = por %p75, %p76
    %p78 = scmp.ne.s32.totalorder %s66, %s67
    %p79 = scmp.eq.s32.totalorder %s15, 1
    %p80 = por %p78, %p79
    %p82 = scmp.ne.s32.totalorder %s67, %s81
    %p83 = scmp.eq.s32.totalorder %s15, 0
    %p84 = por %p82, %p83
    %s85 = ssub.s32 %s9, %s16
    %p86 = scmp.eq.s32.totalorder %s85, 0
    %s88 = sadd.s32 %s87, 1
    %s89 = scalar_select %p86, %s87, %s88
    %p92 = pneg %p86
    %p93 = scmp.eq.s32.totalorder %s9, 1
    %p94 = por %p92, %p93
    %p95 = scmp.ne.s32.totalorder %s87, %s90
    %p96 = scmp.eq.s32.totalorder %s9, 0
    %p97 = por %p95, %p96
    %p98 = scmp.ne.s32.totalorder %s87, %s90
    %p99 = scmp.eq.s32.totalorder %s14, 1
    %p100 = por %p98, %p99
    %p101 = scmp.ne.s32.totalorder %s90, %s91
    %p102 = scmp.eq.s32.totalorder %s14, 0
    %p103 = por %p101, %p102
    %p104 = scmp.ne.s32.totalorder %s90, %s91
    %p105 = scmp.eq.s32.totalorder %s15, 1
    %p106 = por %p104, %p105
    %p108 = scmp.ne.s32.totalorder %s91, %s107
    %p109 = scmp.eq.s32.totalorder %s15, 0
    %p110 = por %p108, %p109
    %p111 = scmp.le.s32.totalorder 1, %s9
    %p112 = scmp.lt.s32.totalorder %s9, 3
    %p113 = pnand %p111, %p112
    %p114 = pneg %p113
    // Predicated region
    $region9: #{time_warp_forward.1} parent=5 // pred_check
      _
    $region10: #{time_warp_forward.1} parent=5 // pred_check_branch
      %116 = sbr.rel (%p113) target = $region12
    $region11: #{time_warp_forward.1} parent=5 // pred_region
      %s117 = ssub.s32 %s9, 1
      // Predicated region
      $region13: #{time_warp_forward.1} parent=11 // pred_check
        %p118 = pneg %p56
      $region14: #{time_warp_forward.1} parent=11 // pred_check_branch
        %120 = sbr.rel (%p118) target = $region16
      $region15: #{time_warp_forward.1} parent=11 // pred_region
        _
      $region16: #{time_warp_forward.1} parent=11 // pred_fallthru
        _
      // Predicated region
      $region17: #{time_warp_forward.1} parent=11 // pred_check
        %p121 = pneg %p77
      $region18: #{time_warp_forward.1} parent=11 // pred_check_branch
        %123 = sbr.rel (%p121) target = $region20
      $region19: #{time_warp_forward.1} parent=11 // pred_region
        _
      $region20: #{time_warp_forward.1} parent=11 // pred_fallthru
        _
    $region12: #{time_warp_forward.1} parent=5 // pred_fallthru
      _
    %p124 = scmp.lt.s32.totalorder %s9, 2
    // Predicated region
    $region21: #{time_warp_forward.1} parent=5 // pred_check
      %p125 = pneg %p124
    $region22: #{time_warp_forward.1} parent=5 // pred_check_branch
      %127 = sbr.rel (%p125) target = $region24
    $region23: #{time_warp_forward.1} parent=5 // pred_region
      // Predicated region
      $region25: #{time_warp_forward.1} parent=23 // pred_check
        %p128 = pneg %p29
      $region26: #{time_warp_forward.1} parent=23 // pred_check_branch
        %130 = sbr.rel (%p128) target = $region28
      $region27: #{time_warp_forward.1} parent=23 // pred_region
        %s131 = smul.u32 4, %s9
        %p132 = scmp.lt.s32.totalorder %s131, 7
        %s133 = scalar_select %p132, %s131, 7
        %s134 = smul.addr %s133, 2
        %s135 = smul.addr %s134, 8
        %s136 = scalar_lea.vmem %s0, %s135
        %s137 = smul.u32 4, %s9
      $region28: #{time_warp_forward.1} parent=23 // pred_fallthru
        _
    $region24: #{time_warp_forward.1} parent=5 // pred_fallthru
      _
    %p138 = scmp.le.s32.totalorder 1, %s9
    %p139 = scmp.lt.s32.totalorder %s9, 3
    %p140 = pnand %p138, %p139
    %p141 = pneg %p140
    // Predicated region
    $region29: #{time_warp_forward.1} parent=5 // pred_check
      _
    $region30: #{time_warp_forward.1} parent=5 // pred_check_branch
      %143 = sbr.rel (%p140) target = $region32
    $region31: #{time_warp_forward.1} parent=5 // pred_region
      %s144 = ssub.s32 %s9, 1
      %s145 = smul.u32 4, %s14
      %p146 = scmp.lt.s32.totalorder %s145, 7
      %s147 = scalar_select %p146, %s145, 7
      %s148 = smul.addr %s147, 2
      %s149 = smul.addr %s148, 8
      %s150 = scalar_lea.vmem %s0, %s149
      %p151 = pneg %p35
      %p152 = pneg %p32
      %p153 = pneg %p56
      %p154 = pneg %p53
      %p155 = pneg %p77
      %p156 = pneg %p74
      %p157 = pneg %p103
      %p158 = pneg %p100
      %s159 = smul.u32 8, %s14
      %p160 = scmp.lt.s32.totalorder %s159, 15
      %s161 = scalar_select %p160, %s159, 15
      %s162 = smul.addr %s161, 2
      %s163 = smul.addr %s162, 8
      %s164 = scalar_lea.vmem %s3, %s163
      %s165 = smul.u32 4, %s14
      %p166 = scmp.lt.s32.totalorder %s165, 7
      %s167 = scalar_select %p166, %s165, 7
      %s168 = smul.addr %s167, 2
      %s169 = smul.addr %s168, 8
      %s170 = scalar_lea.vmem %s0, %s169
      %s171 = smul.u32 4, %s14
      %s172 = smul.u32 8, %s14
      %p173 = scmp.lt.s32.totalorder %s172, 15
      %s174 = scalar_select %p173, %s172, 15
      %s175 = smul.addr %s174, 2
      %s176 = smul.addr %s175, 8
      %s177 = scalar_lea.vmem %s3, %s176
      %s178 = smul.u32 8, %s14
      %v179 = vld [vmem:[%s170] sm:$0xff]
      %v180 = vld [vmem:[%s170 + $0x8] sm:$0xff]
      %v181 = vld [vmem:[%s170 + $0x10] sm:$0xff]
      %v182 = vld [vmem:[%s170 + $0x18] sm:$0xff]
      %v183 = vld [vmem:[%s170 + $0x20] sm:$0xff]
      %v184 = vld [vmem:[%s170 + $0x28] sm:$0xff]
      %v185 = vld [vmem:[%s170 + $0x30] sm:$0xff]
      %v186 = vld [vmem:[%s170 + $0x38] sm:$0xff]
      %v187 = vlaneseq
      %v188 = vand.u32 %v187, 127
      %v189 = vadd.s32 %v188, 128
      %v190 = vand.u32 %v188, 15
      %v191 = vand.u32 %v189, 15
      %192 = vrot.lane.b32.xlu0 %v179, 17
      %v193 = vpop.permute.xlu0 %192
      %194 = vrot.lane.b32.xlu0 %v181, 17
      %v195 = vpop.permute.xlu0 %194
      %196 = vrot.lane.b32.xlu0 %v183, 17
      %v197 = vpop.permute.xlu0 %196
      %198 = vrot.lane.b32.xlu0 %v185, 17
      %v199 = vpop.permute.xlu0 %198
      %200 = vrot.lane.b32.xlu0 %v180, 17
      %v201 = vpop.permute.xlu0 %200
      %202 = vrot.lane.b32.xlu0 %v182, 17
      %v203 = vpop.permute.xlu0 %202
      %204 = vrot.lane.b32.xlu0 %v184, 17
      %v205 = vpop.permute.xlu0 %204
      %206 = vrot.lane.b32.xlu0 %v186, 17
      %v207 = vpop.permute.xlu0 %206
      %vm208 = vcmp.lt.s32.totalorder %v188, 17
      %v209 = vsel %vm208, %v193, %v201
      %v210 = vsel %vm208, %v195, %v203
      %v211 = vsel %vm208, %v197, %v205
      %v212 = vsel %vm208, %v199, %v207
      %v213 = vsel %vm208, %v201, %v193
      %v214 = vsel %vm208, %v203, %v195
      %v215 = vsel %vm208, %v205, %v197
      %v216 = vsel %vm208, %v207, %v199
      %vm217 = vcmp.ge.s32.totalorder %v188, 16
      %vm218 = vcmp.ge.s32.totalorder %v189, 16
      %vm219 = vcmp.lt.s32.totalorder %v188, 256
      %vm220 = vcmp.lt.s32.totalorder %v189, 256
      %vm221 = vmand %vm217, %vm219
      %vm222 = vmand %vm218, %vm220
      %vm223 = vcmp.ge.s32.totalorder %v190, 1
      %vm224 = vcmp.ge.s32.totalorder %v191, 1
      %vm225 = vmand %vm221, %vm223
      %vm226 = vmand %vm222, %vm224
      %v227 = vsel %vm225, %v213, 0.0
      %v228 = vsel %vm226, %v209, 0.0
      %v229 = vsel %vm225, %v214, 0.0
      %v230 = vsel %vm226, %v210, 0.0
      %v231 = vsel %vm225, %v215, 0.0
      %v232 = vsel %vm226, %v211, 0.0
      %v233 = vsel %vm225, %v216, 0.0
      %v234 = vsel %vm226, %v212, 0.0
      %235 = vrot.lane.b32.xlu0 %v179, 16
      %v236 = vpop.permute.xlu0 %235
      %237 = vrot.lane.b32.xlu0 %v181, 16
      %v238 = vpop.permute.xlu0 %237
      %239 = vrot.lane.b32.xlu0 %v183, 16
      %v240 = vpop.permute.xlu0 %239
      %241 = vrot.lane.b32.xlu0 %v185, 16
      %v242 = vpop.permute.xlu0 %241
      %243 = vrot.lane.b32.xlu0 %v180, 16
      %v244 = vpop.permute.xlu0 %243
      %245 = vrot.lane.b32.xlu0 %v182, 16
      %v246 = vpop.permute.xlu0 %245
      %247 = vrot.lane.b32.xlu0 %v184, 16
      %v248 = vpop.permute.xlu0 %247
      %249 = vrot.lane.b32.xlu0 %v186, 16
      %v250 = vpop.permute.xlu0 %249
      %vm251 = vcmp.lt.s32.totalorder %v188, 16
      %v252 = vsel %vm251, %v236, %v244
      %v253 = vsel %vm251, %v238, %v246
      %v254 = vsel %vm251, %v240, %v248
      %v255 = vsel %vm251, %v242, %v250
      %v256 = vsel %vm251, %v244, %v236
      %v257 = vsel %vm251, %v246, %v238
      %v258 = vsel %vm251, %v248, %v240
      %v259 = vsel %vm251, %v250, %v242
      %v260 = vsel %vm221, %v256, 0.0
      %v261 = vsel %vm222, %v252, 0.0
      %v262 = vsel %vm221, %v257, 0.0
      %v263 = vsel %vm222, %v253, 0.0
      %v264 = vsel %vm221, %v258, 0.0
      %v265 = vsel %vm222, %v254, 0.0
      %v266 = vsel %vm221, %v259, 0.0
      %v267 = vsel %vm222, %v255, 0.0
      %268 = vrot.lane.b32.xlu0 %v179, 15
      %v269 = vpop.permute.xlu0 %268
      %270 = vrot.lane.b32.xlu0 %v181, 15
      %v271 = vpop.permute.xlu0 %270
      %272 = vrot.lane.b32.xlu0 %v183, 15
      %v273 = vpop.permute.xlu0 %272
      %274 = vrot.lane.b32.xlu0 %v185, 15
      %v275 = vpop.permute.xlu0 %274
      %276 = vrot.lane.b32.xlu0 %v180, 15
      %v277 = vpop.permute.xlu0 %276
      %278 = vrot.lane.b32.xlu0 %v182, 15
      %v279 = vpop.permute.xlu0 %278
      %280 = vrot.lane.b32.xlu0 %v184, 15
      %v281 = vpop.permute.xlu0 %280
      %282 = vrot.lane.b32.xlu0 %v186, 15
      %v283 = vpop.permute.xlu0 %282
      %vm284 = vcmp.lt.s32.totalorder %v188, 15
      %v285 = vsel %vm284, %v269, %v277
      %v286 = vsel %vm284, %v271, %v279
      %v287 = vsel %vm284, %v273, %v281
      %v288 = vsel %vm284, %v275, %v283
      %v289 = vsel %vm284, %v277, %v269
      %v290 = vsel %vm284, %v279, %v271
      %v291 = vsel %vm284, %v281, %v273
      %v292 = vsel %vm284, %v283, %v275
      %vm293 = vcmp.lt.s32.totalorder %v190, 15
      %vm294 = vcmp.lt.s32.totalorder %v191, 15
      %vm295 = vmand %vm221, %vm293
      %vm296 = vmand %vm222, %vm294
      %v297 = vsel %vm295, %v289, 0.0
      %v298 = vsel %vm296, %v285, 0.0
      %v299 = vsel %vm295, %v290, 0.0
      %v300 = vsel %vm296, %v286, 0.0
      %v301 = vsel %vm295, %v291, 0.0
      %v302 = vsel %vm296, %v287, 0.0
      %v303 = vsel %vm295, %v292, 0.0
      %v304 = vsel %vm296, %v288, 0.0
      %305 = vrot.lane.b32.xlu0 %v179, 1
      %v306 = vpop.permute.xlu0 %305
      %307 = vrot.lane.b32.xlu0 %v181, 1
      %v308 = vpop.permute.xlu0 %307
      %309 = vrot.lane.b32.xlu0 %v183, 1
      %v310 = vpop.permute.xlu0 %309
      %311 = vrot.lane.b32.xlu0 %v185, 1
      %v312 = vpop.permute.xlu0 %311
      %313 = vrot.lane.b32.xlu0 %v180, 1
      %v314 = vpop.permute.xlu0 %313
      %315 = vrot.lane.b32.xlu0 %v182, 1
      %v316 = vpop.permute.xlu0 %315
      %317 = vrot.lane.b32.xlu0 %v184, 1
      %v318 = vpop.permute.xlu0 %317
      %319 = vrot.lane.b32.xlu0 %v186, 1
      %v320 = vpop.permute.xlu0 %319
      %vm321 = vcmp.lt.s32.totalorder %v188, 1
      %v322 = vsel %vm321, %v306, %v314
      %v323 = vsel %vm321, %v308, %v316
      %v324 = vsel %vm321, %v310, %v318
      %v325 = vsel %vm321, %v312, %v320
      %v326 = vsel %vm321, %v314, %v306
      %v327 = vsel %vm321, %v316, %v308
      %v328 = vsel %vm321, %v318, %v310
      %v329 = vsel %vm321, %v320, %v312
      %vm330 = vcmp.ge.s32.totalorder %v188, 0
      %vm331 = vcmp.ge.s32.totalorder %v189, 0
      %vm332 = vmand %vm330, %vm219
      %vm333 = vmand %vm331, %vm220
      %vm334 = vmand %vm332, %vm223
      %vm335 = vmand %vm333, %vm224
      %v336 = vsel %vm334, %v326, 0.0
      %v337 = vsel %vm335, %v322, 0.0
      %v338 = vsel %vm334, %v327, 0.0
      %v339 = vsel %vm335, %v323, 0.0
      %v340 = vsel %vm334, %v328, 0.0
      %v341 = vsel %vm335, %v324, 0.0
      %v342 = vsel %vm334, %v329, 0.0
      %v343 = vsel %vm335, %v325, 0.0
      %v344 = vsel %vm332, %v179, 0.0
      %v345 = vsel %vm333, %v180, 0.0
      %v346 = vsel %vm332, %v181, 0.0
      %v347 = vsel %vm333, %v182, 0.0
      %v348 = vsel %vm332, %v183, 0.0
      %v349 = vsel %vm333, %v184, 0.0
      %v350 = vsel %vm332, %v185, 0.0
      %v351 = vsel %vm333, %v186, 0.0
      %352 = vrot.lane.b32.xlu0 %v179, 127
      %v353 = vpop.permute.xlu0 %352
      %354 = vrot.lane.b32.xlu0 %v181, 127
      %v355 = vpop.permute.xlu0 %354
      %356 = vrot.lane.b32.xlu0 %v183, 127
      %v357 = vpop.permute.xlu0 %356
      %358 = vrot.lane.b32.xlu0 %v185, 127
      %v359 = vpop.permute.xlu0 %358
      %360 = vrot.lane.b32.xlu0 %v180, 127
      %v361 = vpop.permute.xlu0 %360
      %362 = vrot.lane.b32.xlu0 %v182, 127
      %v363 = vpop.permute.xlu0 %362
      %364 = vrot.lane.b32.xlu0 %v184, 127
      %v365 = vpop.permute.xlu0 %364
      %366 = vrot.lane.b32.xlu0 %v186, 127
      %v367 = vpop.permute.xlu0 %366
      %vm368 = vcmp.lt.s32.totalorder %v188, 127
      %v369 = vsel %vm368, %v353, %v361
      %v370 = vsel %vm368, %v355, %v363
      %v371 = vsel %vm368, %v357, %v365
      %v372 = vsel %vm368, %v359, %v367
      %v373 = vsel %vm368, %v361, %v353
      %v374 = vsel %vm368, %v363, %v355
      %v375 = vsel %vm368, %v365, %v357
      %v376 = vsel %vm368, %v367, %v359
      %vm377 = vmand %vm332, %vm293
      %vm378 = vmand %vm333, %vm294
      %v379 = vsel %vm377, %v369, 0.0
      %v380 = vsel %vm378, %v373, 0.0
      %v381 = vsel %vm377, %v370, 0.0
      %v382 = vsel %vm378, %v374, 0.0
      %v383 = vsel %vm377, %v371, 0.0
      %v384 = vsel %vm378, %v375, 0.0
      %v385 = vsel %vm377, %v372, 0.0
      %v386 = vsel %vm378, %v376, 0.0
      %387 = vrot.lane.b32.xlu0 %v179, 113
      %v388 = vpop.permute.xlu0 %387
      %389 = vrot.lane.b32.xlu0 %v181, 113
      %v390 = vpop.permute.xlu0 %389
      %391 = vrot.lane.b32.xlu0 %v183, 113
      %v392 = vpop.permute.xlu0 %391
      %393 = vrot.lane.b32.xlu0 %v185, 113
      %v394 = vpop.permute.xlu0 %393
      %395 = vrot.lane.b32.xlu0 %v180, 113
      %v396 = vpop.permute.xlu0 %395
      %397 = vrot.lane.b32.xlu0 %v182, 113
      %v398 = vpop.permute.xlu0 %397
      %399 = vrot.lane.b32.xlu0 %v184, 113
      %v400 = vpop.permute.xlu0 %399
      %401 = vrot.lane.b32.xlu0 %v186, 113
      %v402 = vpop.permute.xlu0 %401
      %vm403 = vcmp.lt.s32.totalorder %v188, 113
      %v404 = vsel %vm403, %v388, %v396
      %v405 = vsel %vm403, %v390, %v398
      %v406 = vsel %vm403, %v392, %v400
      %v407 = vsel %vm403, %v394, %v402
      %v408 = vsel %vm403, %v396, %v388
      %v409 = vsel %vm403, %v398, %v390
      %v410 = vsel %vm403, %v400, %v392
      %v411 = vsel %vm403, %v402, %v394
      %vm412 = vcmp.lt.s32.totalorder %v188, 240
      %vm413 = vcmp.lt.s32.totalorder %v189, 240
      %vm414 = vmand %vm330, %vm412
      %vm415 = vmand %vm331, %vm413
      %vm416 = vmand %vm414, %vm223
      %vm417 = vmand %vm415, %vm224
      %v418 = vsel %vm416, %v404, 0.0
      %v419 = vsel %vm417, %v408, 0.0
      %v420 = vsel %vm416, %v405, 0.0
      %v421 = vsel %vm417, %v409, 0.0
      %v422 = vsel %vm416, %v406, 0.0
      %v423 = vsel %vm417, %v410, 0.0
      %v424 = vsel %vm416, %v407, 0.0
      %v425 = vsel %vm417, %v411, 0.0
      %426 = vrot.lane.b32.xlu0 %v179, 112
      %v427 = vpop.permute.xlu0 %426
      %428 = vrot.lane.b32.xlu0 %v181, 112
      %v429 = vpop.permute.xlu0 %428
      %430 = vrot.lane.b32.xlu0 %v183, 112
      %v431 = vpop.permute.xlu0 %430
      %432 = vrot.lane.b32.xlu0 %v185, 112
      %v433 = vpop.permute.xlu0 %432
      %434 = vrot.lane.b32.xlu0 %v180, 112
      %v435 = vpop.permute.xlu0 %434
      %436 = vrot.lane.b32.xlu0 %v182, 112
      %v437 = vpop.permute.xlu0 %436
      %438 = vrot.lane.b32.xlu0 %v184, 112
      %v439 = vpop.permute.xlu0 %438
      %440 = vrot.lane.b32.xlu0 %v186, 112
      %v441 = vpop.permute.xlu0 %440
      %vm442 = vcmp.lt.s32.totalorder %v188, 112
      %v443 = vsel %vm442, %v427, %v435
      %v444 = vsel %vm442, %v429, %v437
      %v445 = vsel %vm442, %v431, %v439
      %v446 = vsel %vm442, %v433, %v441
      %v447 = vsel %vm442, %v435, %v427
      %v448 = vsel %vm442, %v437, %v429
      %v449 = vsel %vm442, %v439, %v431
      %v450 = vsel %vm442, %v441, %v433
      %v451 = vsel %vm414, %v443, 0.0
      %v452 = vsel %vm415, %v447, 0.0
      %v453 = vsel %vm414, %v444, 0.0
      %v454 = vsel %vm415, %v448, 0.0
      %v455 = vsel %vm414, %v445, 0.0
      %v456 = vsel %vm415, %v449, 0.0
      %v457 = vsel %vm414, %v446, 0.0
      %v458 = vsel %vm415, %v450, 0.0
      %459 = vrot.lane.b32.xlu0 %v179, 111
      %v460 = vpop.permute.xlu0 %459
      %461 = vrot.lane.b32.xlu0 %v181, 111
      %v462 = vpop.permute.xlu0 %461
      %463 = vrot.lane.b32.xlu0 %v183, 111
      %v464 = vpop.permute.xlu0 %463
      %465 = vrot.lane.b32.xlu0 %v185, 111
      %v466 = vpop.permute.xlu0 %465
      %467 = vrot.lane.b32.xlu0 %v180, 111
      %v468 = vpop.permute.xlu0 %467
      %469 = vrot.lane.b32.xlu0 %v182, 111
      %v470 = vpop.permute.xlu0 %469
      %471 = vrot.lane.b32.xlu0 %v184, 111
      %v472 = vpop.permute.xlu0 %471
      %473 = vrot.lane.b32.xlu0 %v186, 111
      %v474 = vpop.permute.xlu0 %473
      %vm475 = vcmp.lt.s32.totalorder %v188, 111
      %v476 = vsel %vm475, %v460, %v468
      %v477 = vsel %vm475, %v462, %v470
      %v478 = vsel %vm475, %v464, %v472
      %v479 = vsel %vm475, %v466, %v474
      %v480 = vsel %vm475, %v468, %v460
      %v481 = vsel %vm475, %v470, %v462
      %v482 = vsel %vm475, %v472, %v464
      %v483 = vsel %vm475, %v474, %v466
      %vm484 = vmand %vm414, %vm293
      %vm485 = vmand %vm415, %vm294
      %v486 = vsel %vm484, %v476, 0.0
      %v487 = vsel %vm485, %v480, 0.0
      %v488 = vsel %vm484, %v477, 0.0
      %v489 = vsel %vm485, %v481, 0.0
      %v490 = vsel %vm484, %v478, 0.0
      %v491 = vsel %vm485, %v482, 0.0
      %v492 = vsel %vm484, %v479, 0.0
      %v493 = vsel %vm485, %v483, 0.0
      %v494 = vld [vmem:[%s1] sm:$0xff]
      %v495 = vld [vmem:[%s1 + $0x8] sm:$0xff]
      %v496 = vld [vmem:[%s1 + $0x10] sm:$0xff]
      %v497 = vld [vmem:[%s1 + $0x18] sm:$0xff]
      %v498 = vld [vmem:[%s1 + $0x20] sm:$0xff]
      %v499 = vld [vmem:[%s1 + $0x28] sm:$0xff]
      %v500 = vld [vmem:[%s1 + $0x30] sm:$0xff]
      %v501 = vld [vmem:[%s1 + $0x38] sm:$0xff]
      %v502 = vld [vmem:[%s1 + $0x40] sm:$0xff]
      %v503 = vld [vmem:[%s1 + $0x48] sm:$0xff]
      %v504 = vld [vmem:[%s1 + $0x50] sm:$0xff]
      %v505 = vld [vmem:[%s1 + $0x58] sm:$0xff]
      %v506 = vld [vmem:[%s1 + $0x60] sm:$0xff]
      %v507 = vld [vmem:[%s1 + $0x68] sm:$0xff]
      %v508 = vld [vmem:[%s1 + $0x70] sm:$0xff]
      %v509 = vld [vmem:[%s1 + $0x78] sm:$0xff]
      %v510 = vld [vmem:[%s1 + $0x80] sm:$0xff]
      %v511 = vld [vmem:[%s1 + $0x88] sm:$0xff]
      %v512 = vld [vmem:[%s1 + $0x90] sm:$0xff]
      %v513 = vld [vmem:[%s1 + $0x98] sm:$0xff]
      %v514 = vld [vmem:[%s1 + $0xa0] sm:$0xff]
      %v515 = vld [vmem:[%s1 + $0xa8] sm:$0xff]
      %v516 = vld [vmem:[%s1 + $0xb0] sm:$0xff]
      %v517 = vld [vmem:[%s1 + $0xb8] sm:$0xff]
      %v518 = vld [vmem:[%s2] sm:$0xff]
      %v519 = vld [vmem:[%s2 + $0x8] sm:$0xff]
      %v520 = vld [vmem:[%s2 + $0x10] sm:$0xff]
      %v521 = vld [vmem:[%s2 + $0x18] sm:$0xff]
      %v522 = vld [vmem:[%s2 + $0x20] sm:$0xff]
      %v523 = vld [vmem:[%s2 + $0x28] sm:$0xff]
      %v524 = vld [vmem:[%s2 + $0x30] sm:$0xff]
      %v525 = vld [vmem:[%s2 + $0x38] sm:$0xff]
      %527 = vset.pattern.permute.xlu0 0
      %528 = vperm.xlu0 %527, %v518
      %v529 = vpop.permute.xlu0 %528
      %532 = vset.pattern.permute.xlu0 0
      %533 = vperm.xlu0 %532, %v519
      %v534 = vpop.permute.xlu0 %533
      %537 = vset.pattern.permute.xlu0 0
      %538 = vperm.xlu0 %537, %v520
      %v539 = vpop.permute.xlu0 %538
      %542 = vset.pattern.permute.xlu0 0
      %543 = vperm.xlu0 %542, %v521
      %v544 = vpop.permute.xlu0 %543
      %547 = vset.pattern.permute.xlu0 0
      %548 = vperm.xlu0 %547, %v522
      %v549 = vpop.permute.xlu0 %548
      %552 = vset.pattern.permute.xlu0 0
      %553 = vperm.xlu0 %552, %v523
      %v554 = vpop.permute.xlu0 %553
      %557 = vset.pattern.permute.xlu0 0
      %558 = vperm.xlu0 %557, %v524
      %v559 = vpop.permute.xlu0 %558
      %562 = vset.pattern.permute.xlu0 0
      %563 = vperm.xlu0 %562, %v525
      %v564 = vpop.permute.xlu0 %563
      %vm566 = vcmask 261120
      %v568 = vsel %vm566, %v496, 0
      %v571 = vsel %vm566, %v499, 0
      %v574 = vsel %vm566, %v502, 0
      %v577 = vsel %vm566, %v505, 0
      %v580 = vsel %vm566, %v508, 0
      %v583 = vsel %vm566, %v511, 0
      %v586 = vsel %vm566, %v514, 0
      %v589 = vsel %vm566, %v517, 0
      %591 = vmatprep.subr.mxu0 %v343
      %592 = vmatpush1.msra.mxu0 %v342
      %593 = vmatprep.subr.mxu0 %v341
      %594 = vmatpush1.msra.mxu0 %v340
      %595 = vmatprep.subr.mxu0 %v339
      %596 = vmatpush1.msra.mxu0 %v338
      %597 = vmatprep.subr.mxu0 %v337
      %598 = vmatpush1.msra.mxu0 %v336
      %599 = vmatprep.subr.mxu0 %v304
      %600 = vmatpush1.msra.mxu0 %v303
      %601 = vmatprep.subr.mxu0 %v302
      %602 = vmatpush1.msra.mxu0 %v301
      %603 = vmatprep.subr.mxu0 %v300
      %604 = vmatpush1.msra.mxu0 %v299
      %605 = vmatprep.subr.mxu0 %v298
      %606 = vmatpush1.msra.mxu0 %v297
      %607 = vmatprep.subr.mxu0 %v267
      %608 = vmatpush1.msra.mxu0 %v266
      %609 = vmatprep.subr.mxu0 %v265
      %610 = vmatpush1.msra.mxu0 %v264
      %611 = vmatprep.subr.mxu0 %v263
      %612 = vmatpush1.msra.mxu0 %v262
      %613 = vmatprep.subr.mxu0 %v261
      %614 = vmatpush1.msra.mxu0 %v260
      %615 = vmatprep.subr.mxu0 %v234
      %616 = vmatpush1.msra.mxu0 %v233
      %617 = vmatprep.subr.mxu0 %v232
      %618 = vmatpush1.msra.mxu0 %v231
      %619 = vmatprep.subr.mxu0 %v230
      %620 = vmatpush1.msra.mxu0 %v229
      %621 = vmatprep.subr.mxu0 %v228
      %622 = vmatpush1.msra.mxu0 %v227
      %623 = vmatprep.subr.mxu0 %v458
      %624 = vmatpush2.msra.mxu0 %v457
      %625 = vmatprep.subr.mxu0 %v456
      %626 = vmatpush2.msra.mxu0 %v455
      %627 = vmatprep.subr.mxu0 %v454
      %628 = vmatpush2.msra.mxu0 %v453
      %629 = vmatprep.subr.mxu0 %v452
      %630 = vmatpush2.msra.mxu0 %v451
      %631 = vmatprep.subr.mxu0 %v425
      %632 = vmatpush2.msra.mxu0 %v424
      %633 = vmatprep.subr.mxu0 %v423
      %634 = vmatpush2.msra.mxu0 %v422
      %635 = vmatprep.subr.mxu0 %v421
      %636 = vmatpush2.msra.mxu0 %v420
      %637 = vmatprep.subr.mxu0 %v419
      %638 = vmatpush2.msra.mxu0 %v418
      %639 = vmatprep.subr.mxu0 %v386
      %640 = vmatpush2.msra.mxu0 %v385
      %641 = vmatprep.subr.mxu0 %v384
      %642 = vmatpush2.msra.mxu0 %v383
      %643 = vmatprep.subr.mxu0 %v382
      %644 = vmatpush2.msra.mxu0 %v381
      %645 = vmatprep.subr.mxu0 %v380
      %646 = vmatpush2.msra.mxu0 %v379
      %647 = vmatprep.subr.mxu0 %v351
      %648 = vmatpush2.msra.mxu0 %v350
      %649 = vmatprep.subr.mxu0 %v349
      %650 = vmatpush2.msra.mxu0 %v348
      %651 = vmatprep.subr.mxu0 %v347
      %652 = vmatpush2.msra.mxu0 %v346
      %653 = vmatprep.subr.mxu0 %v345
      %654 = vmatpush2.msra.mxu0 %v344
      %655 = vmatprep.mubr.f32.mxu0 %v495
      %656 = vmatmul.mubr.f32.gmra.mxu0 %v494
      %v657 = vpop.f32.mrf.mxu0
      %v658 = vadd.f32 %v529, %v657
      %v659 = vpop.f32.mrf.mxu0
      %v660 = vadd.f32 %v529, %v659
      %661 = vmatprep.mubr.f32.mxu0 %v498
      %662 = vmatmul.mubr.f32.gmra.mxu0 %v497
      %v663 = vpop.f32.mrf.mxu0
      %v664 = vadd.f32 %v534, %v663
      %v665 = vpop.f32.mrf.mxu0
      %v666 = vadd.f32 %v534, %v665
      %667 = vmatprep.mubr.f32.mxu0 %v501
      %668 = vmatmul.mubr.f32.gmra.mxu0 %v500
      %v669 = vpop.f32.mrf.mxu0
      %v670 = vadd.f32 %v539, %v669
      %v671 = vpop.f32.mrf.mxu0
      %v672 = vadd.f32 %v539, %v671
      %673 = vmatprep.mubr.f32.mxu0 %v504
      %674 = vmatmul.mubr.f32.gmra.mxu0 %v503
      %v675 = vpop.f32.mrf.mxu0
      %v676 = vadd.f32 %v544, %v675
      %v677 = vpop.f32.mrf.mxu0
      %v678 = vadd.f32 %v544, %v677
      %679 = vmatprep.mubr.f32.mxu0 %v507
      %680 = vmatmul.mubr.f32.gmra.mxu0 %v506
      %v681 = vpop.f32.mrf.mxu0
      %v682 = vadd.f32 %v549, %v681
      %v683 = vpop.f32.mrf.mxu0
      %v684 = vadd.f32 %v549, %v683
      %685 = vmatprep.mubr.f32.mxu0 %v510
      %686 = vmatmul.mubr.f32.gmra.mxu0 %v509
      %v687 = vpop.f32.mrf.mxu0
      %v688 = vadd.f32 %v554, %v687
      %v689 = vpop.f32.mrf.mxu0
      %v690 = vadd.f32 %v554, %v689
      %691 = vmatprep.mubr.f32.mxu0 %v513
      %692 = vmatmul.mubr.f32.gmra.mxu0 %v512
      %v693 = vpop.f32.mrf.mxu0
      %v694 = vadd.f32 %v559, %v693
      %v695 = vpop.f32.mrf.mxu0
      %v696 = vadd.f32 %v559, %v695
      %697 = vmatprep.mubr.f32.mxu0 %v516
      %698 = vmatmul.mubr.f32.gmra.mxu0 %v515
      %v699 = vpop.f32.mrf.mxu0
      %v700 = vadd.f32 %v564, %v699
      %v701 = vpop.f32.mrf.mxu0
      %v702 = vadd.f32 %v564, %v701
      %703 = vdwg.mxu0
      %704 = vmatprep.subr.mxu0 0.0
      %705 = vmatpush1.msra.mxu0 0.0
      %706 = vmatprep.subr.mxu0 0.0
      %707 = vmatpush1.msra.mxu0 0.0
      %708 = vmatprep.subr.mxu0 0.0
      %709 = vmatpush1.msra.mxu0 0.0
      %710 = vmatprep.subr.mxu0 0.0
      %711 = vmatpush1.msra.mxu0 0.0
      %712 = vmatprep.subr.mxu0 0.0
      %713 = vmatpush1.msra.mxu0 0.0
      %714 = vmatprep.subr.mxu0 0.0
      %715 = vmatpush1.msra.mxu0 0.0
      %716 = vmatprep.subr.mxu0 0.0
      %717 = vmatpush1.msra.mxu0 0.0
      %718 = vmatprep.subr.mxu0 0.0
      %719 = vmatpush1.msra.mxu0 0.0
      %720 = vmatprep.subr.mxu0 0.0
      %721 = vmatpush1.msra.mxu0 0.0
      %722 = vmatprep.subr.mxu0 0.0
      %723 = vmatpush1.msra.mxu0 0.0
      %724 = vmatprep.subr.mxu0 0.0
      %725 = vmatpush1.msra.mxu0 0.0
      %726 = vmatprep.subr.mxu0 0.0
      %727 = vmatpush1.msra.mxu0 0.0
      %728 = vmatprep.subr.mxu0 %v493
      %729 = vmatpush1.msra.mxu0 %v492
      %730 = vmatprep.subr.mxu0 %v491
      %731 = vmatpush1.msra.mxu0 %v490
      %732 = vmatprep.subr.mxu0 %v489
      %733 = vmatpush1.msra.mxu0 %v488
      %734 = vmatprep.subr.mxu0 %v487
      %735 = vmatpush1.msra.mxu0 %v486
      %736 = vmatprep.subr.mxu0 0.0
      %737 = vmatpush2.msra.mxu0 0.0
      %738 = vmatprep.subr.mxu0 0.0
      %739 = vmatpush2.msra.mxu0 0.0
      %740 = vmatprep.subr.mxu0 0.0
      %741 = vmatpush2.msra.mxu0 0.0
      %742 = vmatprep.subr.mxu0 0.0
      %743 = vmatpush2.msra.mxu0 0.0
      %744 = vmatprep.subr.mxu0 0.0
      %745 = vmatpush2.msra.mxu0 0.0
      %746 = vmatprep.subr.mxu0 0.0
      %747 = vmatpush2.msra.mxu0 0.0
      %748 = vmatprep.subr.mxu0 0.0
      %749 = vmatpush2.msra.mxu0 0.0
      %750 = vmatprep.subr.mxu0 0.0
      %751 = vmatpush2.msra.mxu0 0.0
      %752 = vmatprep.subr.mxu0 0.0
      %753 = vmatpush2.msra.mxu0 0.0
      %754 = vmatprep.subr.mxu0 0.0
      %755 = vmatpush2.msra.mxu0 0.0
      %756 = vmatprep.subr.mxu0 0.0
      %757 = vmatpush2.msra.mxu0 0.0
      %758 = vmatprep.subr.mxu0 0.0
      %759 = vmatpush2.msra.mxu0 0.0
      %760 = vmatprep.subr.mxu0 0.0
      %761 = vmatpush2.msra.mxu0 0.0
      %762 = vmatprep.subr.mxu0 0.0
      %763 = vmatpush2.msra.mxu0 0.0
      %764 = vmatprep.subr.mxu0 0.0
      %765 = vmatpush2.msra.mxu0 0.0
      %766 = vmatprep.subr.mxu0 0.0
      %767 = vmatpush2.msra.mxu0 0.0
      %768 = vmatprep.mubr.f32.mxu0 0.0
      %769 = vmatmul.mubr.f32.gmra.mxu0 %v568
      %v770 = vpop.f32.mrf.mxu0
      %v771 = vadd.f32 %v658, %v770
      %v772 = vpop.f32.mrf.mxu0
      %v773 = vadd.f32 %v660, %v772
      %774 = vmatprep.mubr.f32.mxu0 0.0
      %775 = vmatmul.mubr.f32.gmra.mxu0 %v571
      %v776 = vpop.f32.mrf.mxu0
      %v777 = vadd.f32 %v664, %v776
      %v778 = vpop.f32.mrf.mxu0
      %v779 = vadd.f32 %v666, %v778
      %780 = vmatprep.mubr.f32.mxu0 0.0
      %781 = vmatmul.mubr.f32.gmra.mxu0 %v574
      %v782 = vpop.f32.mrf.mxu0
      %v783 = vadd.f32 %v670, %v782
      %v784 = vpop.f32.mrf.mxu0
      %v785 = vadd.f32 %v672, %v784
      %786 = vmatprep.mubr.f32.mxu0 0.0
      %787 = vmatmul.mubr.f32.gmra.mxu0 %v577
      %v788 = vpop.f32.mrf.mxu0
      %v789 = vadd.f32 %v676, %v788
      %v790 = vpop.f32.mrf.mxu0
      %v791 = vadd.f32 %v678, %v790
      %792 = vmatprep.mubr.f32.mxu0 0.0
      %793 = vmatmul.mubr.f32.gmra.mxu0 %v580
      %v794 = vpop.f32.mrf.mxu0
      %v795 = vadd.f32 %v682, %v794
      %v796 = vpop.f32.mrf.mxu0
      %v797 = vadd.f32 %v684, %v796
      %798 = vmatprep.mubr.f32.mxu0 0.0
      %799 = vmatmul.mubr.f32.gmra.mxu0 %v583
      %v800 = vpop.f32.mrf.mxu0
      %v801 = vadd.f32 %v688, %v800
      %v802 = vpop.f32.mrf.mxu0
      %v803 = vadd.f32 %v690, %v802
      %804 = vmatprep.mubr.f32.mxu0 0.0
      %805 = vmatmul.mubr.f32.gmra.mxu0 %v586
      %v806 = vpop.f32.mrf.mxu0
      %v807 = vadd.f32 %v694, %v806
      %v808 = vpop.f32.mrf.mxu0
      %v809 = vadd.f32 %v696, %v808
      %810 = vmatprep.mubr.f32.mxu0 0.0
      %811 = vmatmul.mubr.f32.gmra.mxu0 %v589
      %v812 = vpop.f32.mrf.mxu0
      %v813 = vadd.f32 %v700, %v812
      %v814 = vpop.f32.mrf.mxu0
      %v815 = vadd.f32 %v702, %v814
      %816 = vdwg.mxu0
      %v817 = vmax.f32 %v771, 0.0
      %v818 = vmax.f32 %v773, 0.0
      %v819 = vmax.f32 %v777, 0.0
      %v820 = vmax.f32 %v779, 0.0
      %v821 = vmax.f32 %v783, 0.0
      %v822 = vmax.f32 %v785, 0.0
      %v823 = vmax.f32 %v789, 0.0
      %v824 = vmax.f32 %v791, 0.0
      %v825 = vmax.f32 %v795, 0.0
      %v826 = vmax.f32 %v797, 0.0
      %v827 = vmax.f32 %v801, 0.0
      %v828 = vmax.f32 %v803, 0.0
      %v829 = vmax.f32 %v807, 0.0
      %v830 = vmax.f32 %v809, 0.0
      %v831 = vmax.f32 %v813, 0.0
      %v832 = vmax.f32 %v815, 0.0
      %833 = vst [vmem:[%s177] sm:$0xff] %v817
      %834 = vst [vmem:[%s177 + $0x8] sm:$0xff] %v818
      %835 = vst [vmem:[%s177 + $0x10] sm:$0xff] %v819
      %836 = vst [vmem:[%s177 + $0x18] sm:$0xff] %v820
      %837 = vst [vmem:[%s177 + $0x20] sm:$0xff] %v821
      %838 = vst [vmem:[%s177 + $0x28] sm:$0xff] %v822
      %839 = vst [vmem:[%s177 + $0x30] sm:$0xff] %v823
      %840 = vst [vmem:[%s177 + $0x38] sm:$0xff] %v824
      %841 = vst [vmem:[%s177 + $0x40] sm:$0xff] %v825
      %842 = vst [vmem:[%s177 + $0x48] sm:$0xff] %v826
      %843 = vst [vmem:[%s177 + $0x50] sm:$0xff] %v827
      %844 = vst [vmem:[%s177 + $0x58] sm:$0xff] %v828
      %845 = vst [vmem:[%s177 + $0x60] sm:$0xff] %v829
      %846 = vst [vmem:[%s177 + $0x68] sm:$0xff] %v830
      %847 = vst [vmem:[%s177 + $0x70] sm:$0xff] %v831
      %848 = vst [vmem:[%s177 + $0x78] sm:$0xff] %v832
      %s849 = smul.u32 8, %s14
      %p850 = scmp.lt.s32.totalorder %s849, 15
      %s851 = scalar_select %p850, %s849, 15
      %s852 = smul.addr %s851, 2
      %s853 = smul.addr %s852, 8
      %s854 = scalar_lea.vmem %s3, %s853
      // Predicated region
      $region33: #{time_warp_forward.1} parent=31 // pred_check
        %p855 = pneg %p100
      $region34: #{time_warp_forward.1} parent=31 // pred_check_branch
        %857 = sbr.rel (%p855) target = $region36
      $region35: #{time_warp_forward.1} parent=31 // pred_region
        %s858 = smul.u32 8, %s14
      $region36: #{time_warp_forward.1} parent=31 // pred_fallthru
        _
    $region32: #{time_warp_forward.1} parent=5 // pred_fallthru
      _
    %p859 = scmp.le.s32.totalorder 2, %s9
    // Predicated region
    $region37: #{time_warp_forward.1} parent=5 // pred_check
      %p860 = pneg %p859
    $region38: #{time_warp_forward.1} parent=5 // pred_check_branch
      %862 = sbr.rel (%p860) target = $region40
    $region39: #{time_warp_forward.1} parent=5 // pred_region
      %s863 = ssub.s32 %s9, 2
      // Predicated region
      $region41: #{time_warp_forward.1} parent=39 // pred_check
        %p864 = pneg %p106
      $region42: #{time_warp_forward.1} parent=39 // pred_check_branch
        %866 = sbr.rel (%p864) target = $region44
      $region43: #{time_warp_forward.1} parent=39 // pred_region
        %s867 = smul.u32 8, %s15
        %p868 = scmp.lt.s32.totalorder %s867, 15
        %s869 = scalar_select %p868, %s867, 15
        %s870 = smul.addr %s869, 2
        %s871 = smul.addr %s870, 8
        %s872 = scalar_lea.vmem %s3, %s871
      $region44: #{time_warp_forward.1} parent=39 // pred_fallthru
        _
    $region40: #{time_warp_forward.1} parent=5 // pred_fallthru
      _
  $region6: #{time_warp_forward.1} parent=0 // loop_footer
    %s13 = sadd.s32 1, %s9
  $region7: #{time_warp_forward.1} parent=0 // loop_footer_branch
    %8 = sbr.rel target = $region3
  $region8: #{time_warp_forward.1} parent=0 // loop_exit
    _

</llo_original>
